<compile_context>
chip_gen: v7x
topology: tpu7x:2x2x1
jax: 0.10.0
libtpu: 0.0.40
codegen_flags: <defaults>
</compile_context>

<pallas_src>
import functools

import jax
import jax.numpy as jnp
from jax.experimental import pallas as pl
from jax.experimental.pallas import tpu as pltpu

_LANE = 128
_SUBLANE = 8


def _linear_sumsq_kernel(x_ref, w_ref, b_ref, y_ref, partial_ref, *,
                         batch_tile, valid_rows, need_row_mask):
    """One grid step: y_tile = x_tile @ W + b (lane-dense, D_out padded to 128) and an
    (8, 128) per-program partial sum of y**2 (final scalar reduce done in the wrapper)."""
    i = pl.program_id(0)

    y = jnp.dot(x_ref[...], w_ref[...], preferred_element_type=jnp.float32)
    y = y + b_ref[...]  # broadcast (1, D_out_p) over the batch tile

    if need_row_mask:
        # zero out rows that only exist because of batch padding (so they don't add bias**2)
        row = jax.lax.broadcasted_iota(jnp.int32, y.shape, 0) + i * batch_tile
        y = jnp.where(row < valid_rows, y, 0.0)

    y_ref[...] = y.astype(y_ref.dtype)

    ysq = y * y
    # Group-reduce the batch rows down to a single sublane/lane-dense (8, 128) tile per program.
    partial = jnp.sum(
        ysq.reshape(batch_tile // _SUBLANE, _SUBLANE, ysq.shape[-1]), axis=0)
    partial_ref[...] = partial


def base_model_forward(x, w, b, *, max_batch_tile=512):
    """Pallas equivalent of BaseModel.forward: returns ({'loss': sum(linear(x)**2),
    'metric': 0}, y).  y is returned for testing only; the module returns just the dict."""
    B, D_in = x.shape
    D_in_w, D_out = w.shape
    assert D_in == D_in_w
    b = b.reshape(1, D_out)

    # Lane-dense output: zero-pad D_out to a multiple of 128.  Padded columns produce
    # exact zeros (zero weight columns + zero bias), so they contribute nothing to the loss.
    d_out_p = pl.cdiv(D_out, _LANE) * _LANE
    if d_out_p != D_out:
        w = jnp.pad(w, ((0, 0), (0, d_out_p - D_out)))
        b = jnp.pad(b, ((0, 0), (0, d_out_p - D_out)))

    # One big batch tile (single grid step) when it fits; otherwise tile the batch axis.
    if B <= max_batch_tile:
        batch_tile = pl.cdiv(B, _SUBLANE) * _SUBLANE
    else:
        batch_tile = max_batch_tile
    b_p = pl.cdiv(B, batch_tile) * batch_tile
    need_row_mask = b_p != B
    if need_row_mask:
        x = jnp.pad(x, ((0, b_p - B), (0, 0)))

    num_programs = b_p // batch_tile

    kernel = functools.partial(
        _linear_sumsq_kernel,
        batch_tile=batch_tile,
        valid_rows=B,
        need_row_mask=need_row_mask,
    )

    y_p, partials = pl.pallas_call(
        kernel,
        out_shape=(
            jax.ShapeDtypeStruct((b_p, d_out_p), jnp.float32),
            jax.ShapeDtypeStruct((num_programs * _SUBLANE, d_out_p), jnp.float32),
        ),
        grid_spec=pltpu.PrefetchScalarGridSpec(
            num_scalar_prefetch=0,
            grid=(num_programs,),
            in_specs=[
                pl.BlockSpec((batch_tile, D_in), lambda i: (i, 0)),   # x tile
                pl.BlockSpec((D_in, d_out_p), lambda i: (0, 0)),      # full (padded) weight
                pl.BlockSpec((1, d_out_p), lambda i: (0, 0)),         # bias
            ],
            out_specs=[
                pl.BlockSpec((batch_tile, d_out_p), lambda i: (i, 0)),   # y tile (lane-dense)
                pl.BlockSpec((_SUBLANE, d_out_p), lambda i: (i, 0)),     # per-program partials
            ],
        ),
        compiler_params=pltpu.CompilerParams(
            # per-program partials + disjoint y tiles -> batch axis is truly parallel
            # (usable by v7x's 2 TensorCores without touching the loss semantics)
            dimension_semantics=("parallel",),
        ),
    )(x, w, b)

    loss = jnp.sum(partials)          # padded rows/cols are exact zeros -> safe to sum all
    y = y_p[:B, :D_out]

    output_dict = {
        "loss": loss,
        "metric": 0,
    }
    return output_dict, y


if __name__ == "__main__":
    # Small shapes implied by the wrapped nn.Linear: batch=16, in_features=32, out_features=32.
    B, D_in, D_out = 16, 32, 32

    key = jax.random.PRNGKey(0)
    kx, kw, kb = jax.random.split(key, 3)

    x = jax.random.normal(kx, (B, D_in), dtype=jnp.float32)
    # Deterministic "Linear" parameters (PyTorch stores weight as [D_out, D_in];
    # we keep it pre-transposed to [D_in, D_out] for x @ W).
    w = jax.random.normal(kw, (D_in, D_out), dtype=jnp.float32) * (1.0 / jnp.sqrt(D_in))
    b = jax.random.normal(kb, (1, D_out), dtype=jnp.float32) * 0.01

    out_dict, y = base_model_forward(x, w, b)
    jax.block_until_ready(out_dict["loss"])

    # Plain-JAX reference check of the forward semantics.
    y_ref = x @ w + b
    loss_ref = jnp.sum(y_ref ** 2)
    assert jnp.allclose(out_dict["loss"], loss_ref, rtol=1e-5, atol=1e-4), (
        out_dict["loss"], loss_ref)
    assert jnp.allclose(y, y_ref, rtol=1e-5, atol=1e-5)
    assert out_dict["metric"] == 0

    print("KERNEL_OK")
</pallas_src>

<mosaic_0001>
module attributes {stable_mosaic.version = 11 : i64} {
  func.func @_linear_sumsq_kernel(%arg0: i32, %arg1: memref<16x32xf32, #tpu.memory_space<vmem>>, %arg2: memref<32x128xf32, #tpu.memory_space<vmem>>, %arg3: memref<1x128xf32, #tpu.memory_space<vmem>>, %arg4: memref<16x128xf32, #tpu.memory_space<vmem>>, %arg5: memref<8x128xf32, #tpu.memory_space<vmem>>) attributes {dimension_semantics = [#tpu.dimension_semantics<parallel>], iteration_bounds = array<i64: 1>, scalar_prefetch = 0 : i64, scratch_operands = 0 : i64, tpu.core_type = #tpu.core_type<tc>, window_params = [{transform_indices = @transform_0, window_bounds = array<i64: 16, 32>}, {pipeline_mode = #tpu.pipeline_mode<synchronous>, transform_indices = @transform_1, window_bounds = array<i64: 32, 128>}, {pipeline_mode = #tpu.pipeline_mode<synchronous>, transform_indices = @transform_2, window_bounds = array<i64: 1, 128>}, {transform_indices = @transform_3, window_bounds = array<i64: 16, 128>}, {transform_indices = @transform_4, window_bounds = array<i64: 8, 128>}]} {
    %c0 = arith.constant 0 : index
    %c0_0 = arith.constant 0 : index
    %0 = vector.load %arg1[%c0, %c0_0] : memref<16x32xf32, #tpu.memory_space<vmem>>, vector<16x32xf32>
    %c0_1 = arith.constant 0 : index
    %c0_2 = arith.constant 0 : index
    %1 = vector.load %arg2[%c0_1, %c0_2] : memref<32x128xf32, #tpu.memory_space<vmem>>, vector<32x128xf32>
    %cst = arith.constant dense<0.000000e+00> : vector<16x128xf32>
    %2 = tpu.matmul %0, %1, %cst {dimension_numbers = #tpu.dot_dimension_numbers<[1], [0], [0], [1], [0, 0, 1, 1], [], []>} : vector<16x32xf32>, vector<32x128xf32>, vector<16x128xf32> -> vector<16x128xf32>
    %c0_3 = arith.constant 0 : index
    %c0_4 = arith.constant 0 : index
    %3 = vector.load %arg3[%c0_3, %c0_4] : memref<1x128xf32, #tpu.memory_space<vmem>>, vector<1x128xf32>
    %4 = vector.broadcast %3 : vector<1x128xf32> to vector<16x128xf32>
    %5 = arith.addf %2, %4 : vector<16x128xf32>
    %c0_5 = arith.constant 0 : index
    %c0_6 = arith.constant 0 : index
    %6 = vector.load %arg4[%c0_5, %c0_6] : memref<16x128xf32, #tpu.memory_space<vmem>>, vector<16x128xf32>
    tpu.vector_store %arg4[%c0_5, %c0_6], %5 {strides = array<i32>} : memref<16x128xf32, #tpu.memory_space<vmem>>, vector<16x128xf32>,
    %7 = arith.mulf %5, %5 : vector<16x128xf32>
    %8 = vector.shape_cast %7 : vector<16x128xf32> to vector<2x8x128xf32>
    %cst_7 = arith.constant dense<0.000000e+00> : vector<8x128xf32>
    %9 = vector.multi_reduction <add>, %8, %cst_7 [0] : vector<2x8x128xf32> to vector<8x128xf32>
    %c0_8 = arith.constant 0 : index
    %c0_9 = arith.constant 0 : index
    %10 = vector.load %arg5[%c0_8, %c0_9] : memref<8x128xf32, #tpu.memory_space<vmem>>, vector<8x128xf32>
    tpu.vector_store %arg5[%c0_8, %c0_9], %9 {strides = array<i32>} : memref<8x128xf32, #tpu.memory_space<vmem>>, vector<8x128xf32>,
    return
  }
  func.func @transform_0(%arg0: i32) -> (i32, i32) {
    %c0_i32 = arith.constant 0 : i32
    %c0_i32_0 = arith.constant 0 : i32
    return %arg0, %c0_i32 : i32, i32
  }
  func.func @transform_1(%arg0: i32) -> (i32, i32) {
    %c0_i32 = arith.constant 0 : i32
    %c0_i32_0 = arith.constant 0 : i32
    %c0_i32_1 = arith.constant 0 : i32
    return %c0_i32, %c0_i32_0 : i32, i32
  }
  func.func @transform_2(%arg0: i32) -> (i32, i32) {
    %c0_i32 = arith.constant 0 : i32
    %c0_i32_0 = arith.constant 0 : i32
    %c0_i32_1 = arith.constant 0 : i32
    return %c0_i32, %c0_i32_0 : i32, i32
  }
  func.func @transform_3(%arg0: i32) -> (i32, i32) {
    %c0_i32 = arith.constant 0 : i32
    %c0_i32_0 = arith.constant 0 : i32
    return %arg0, %c0_i32 : i32, i32
  }
  func.func @transform_4(%arg0: i32) -> (i32, i32) {
    %c0_i32 = arith.constant 0 : i32
    %c0_i32_0 = arith.constant 0 : i32
    return %arg0, %c0_i32 : i32, i32
  }
}

</mosaic_0001>

<llo_original>
// kernel: tpu_custom_call.1
$region0: #{tpu_custom_call.1}
  #allocation0 [shape = 'u32[]', space=smem, size = 0x4, offset = 0x4, fixed_abs, tag = 'smem constant byte address 0x4 - core index']
  #allocation1 [shape = 'u32[144,128]{1,0:T(1,128)}', space=vmem, size = 0x12000, scoped, tag = 'internal scratch']
  %s0 = inlined_call_operand.hbm [shape: f32[16,32], index: 0, kind: input, shape index: {}]
  %s1 = inlined_call_operand.hbm [shape: f32[32,128], index: 1, kind: input, shape index: {}]
  %s2 = inlined_call_operand.vmem [shape: f32[1,128], index: 2, kind: input, shape index: {}]
  %s3 = inlined_call_operand.hbm [shape: f32[16,128], index: 3, kind: output, shape index: {0}]
  %s4 = inlined_call_operand.hbm [shape: f32[8,128], index: 4, kind: output, shape index: {1}]
  %5 = xla_tuple %s3, %s4
  %s6 = sld [smem:[#allocation0]]
  $region38: #{tpu_custom_call.1} parent=0
    _
  %s8 = ssub.s32 1, %s6
  %s9 = scalar_select 0, %s8, %s6
  $region1: #{tpu_custom_call.1} parent=0
    #allocation2 [shape = 'u8[8192]{0}', space=vmem, size = 0x2000, scoped, tag = 'input window, operand 0, single buffered']
    #allocation3 [shape = 's32[1]{0}', space=sflag, size = 0x4, scoped, tag = 'scoped memory for tpu_custom_call.1']
    #allocation4 [shape = 's32[1]{0}', space=sflag, size = 0x4, scoped, tag = 'scoped memory for tpu_custom_call.1']
    #allocation5 [shape = 'u8[16384]{0}', space=vmem, size = 0x4000, scoped, tag = 'input window, operand 1, single buffered']
    #allocation6 [shape = 's32[1]{0}', space=sflag, size = 0x4, scoped, tag = 'scoped memory for tpu_custom_call.1']
    #allocation7 [shape = 'u8[8192]{0}', space=vmem, size = 0x2000, scoped, tag = 'output window, operand 0, single buffered']
    #allocation8 [shape = 'u8[4096]{0}', space=vmem, size = 0x1000, scoped, tag = 'output window, operand 1, single buffered']
    #allocation9 [shape = 's32[1]{0}', space=sflag, size = 0x4, scoped, tag = 'scoped memory for tpu_custom_call.1']
    %10 = vsyncpa [#allocation3], 0
    %11 = vsyncpa [#allocation6], 0
    %12 = vsyncpa [#allocation4], 0
    %13 = vsyncpa [#allocation9], 0
    // Predicated region
    $region2: #{tpu_custom_call.1} parent=1 // pred_check
      _
    $region3: #{tpu_custom_call.1} parent=1 // pred_check_branch
      %15 = sbr.rel (0) target = $region5
    $region4: #{tpu_custom_call.1} parent=1 // pred_region
      %s17 = ssub.s32 256, 256
      %18 = vsyncadd [#allocation3], %s17
      %s19 = sshll.u32 [#allocation2], 4
      %s20 = int_to_ptr.vmem [resolvable:$true] %s19
      %25 = dma.hbm_to_vmem [thread:$0]  %s0, 256, %s20, [#allocation3], 128, 128, 8
    $region5: #{tpu_custom_call.1} parent=1 // pred_fallthru
      _
    // Predicated region
    $region6: #{tpu_custom_call.1} parent=1 // pred_check
      _
    $region7: #{tpu_custom_call.1} parent=1 // pred_check_branch
      %27 = sbr.rel (0) target = $region9
    $region8: #{tpu_custom_call.1} parent=1 // pred_region
      %s29 = ssub.s32 512, 512
      %30 = vsyncadd [#allocation6], %s29
      %s31 = sshll.u32 [#allocation5], 4
      %s32 = int_to_ptr.vmem [resolvable:$true] %s31
      %37 = dma.hbm_to_vmem [thread:$0]  %s1, 512, %s32, [#allocation6], 128, 128, 8
    $region9: #{tpu_custom_call.1} parent=1 // pred_fallthru
      _
    // Predicated region
    $region10: #{tpu_custom_call.1} parent=1 // pred_check
      _
    $region11: #{tpu_custom_call.1} parent=1 // pred_check_branch
      %39 = sbr.rel (0) target = $region13
    $region12: #{tpu_custom_call.1} parent=1 // pred_region
      _
    $region13: #{tpu_custom_call.1} parent=1 // pred_fallthru
      _
    // Predicated region
    $region14: #{tpu_custom_call.1} parent=1 // pred_check
      _
    $region15: #{tpu_custom_call.1} parent=1 // pred_check_branch
      %41 = sbr.rel (0) target = $region17
    $region16: #{tpu_custom_call.1} parent=1 // pred_region
      %42 = dma.done [#allocation3], 256
    $region17: #{tpu_custom_call.1} parent=1 // pred_fallthru
      _
    // Predicated region
    $region18: #{tpu_custom_call.1} parent=1 // pred_check
      _
    $region19: #{tpu_custom_call.1} parent=1 // pred_check_branch
      %44 = sbr.rel (0) target = $region21
    $region20: #{tpu_custom_call.1} parent=1 // pred_region
      %45 = dma.done [#allocation6], 512
    $region21: #{tpu_custom_call.1} parent=1 // pred_fallthru
      _
    %v46 = vld [vmem:[#allocation2] sm:$0xff]
    %v47 = vld [vmem:[#allocation2 + $0x8] sm:$0xff]
    %v48 = vld [vmem:[#allocation5] sm:$0xff]
    %v49 = vld [vmem:[#allocation5 + $0x8] sm:$0xff]
    %v50 = vld [vmem:[#allocation5 + $0x10] sm:$0xff]
    %v51 = vld [vmem:[#allocation5 + $0x18] sm:$0xff]
    %v52 = vld [vmem:[%s2] sm:$0x1]
    %v54 = vlaneseq
    %v55 = vshrl.u32 %v54, 7
    %v56 = vsub.s32 0, %v55
    %v57 = vrot.slane %v52, %v56
    %vm59 = vcmask 261120
    %v61 = vsel %vm59, %v46, 0
    %v64 = vsel %vm59, %v47, 0
    %66 = vmatprep.subr.mxu0 0.0
    %67 = vmatpush1.msra.mxu0 %v48
    %68 = vmatprep.subr.mxu0 0.0
    %69 = vmatpush1.msra.mxu0 %v49
    %70 = vmatprep.subr.mxu0 0.0
    %71 = vmatpush1.msra.mxu0 %v50
    %72 = vmatprep.subr.mxu0 0.0
    %73 = vmatpush1.msra.mxu0 %v51
    %74 = vmatprep.subr.mxu0 0.0
    %75 = vmatpush1.msra.mxu0 0.0
    %76 = vmatprep.subr.mxu0 0.0
    %77 = vmatpush1.msra.mxu0 0.0
    %78 = vmatprep.subr.mxu0 0.0
    %79 = vmatpush1.msra.mxu0 0.0
    %80 = vmatprep.subr.mxu0 0.0
    %81 = vmatpush1.msra.mxu0 0.0
    %82 = vmatprep.subr.mxu0 0.0
    %83 = vmatpush1.msra.mxu0 0.0
    %84 = vmatprep.subr.mxu0 0.0
    %85 = vmatpush1.msra.mxu0 0.0
    %86 = vmatprep.subr.mxu0 0.0
    %87 = vmatpush1.msra.mxu0 0.0
    %88 = vmatprep.subr.mxu0 0.0
    %89 = vmatpush1.msra.mxu0 0.0
    %90 = vmatprep.subr.mxu0 0.0
    %91 = vmatpush1.msra.mxu0 0.0
    %92 = vmatprep.subr.mxu0 0.0
    %93 = vmatpush1.msra.mxu0 0.0
    %94 = vmatprep.subr.mxu0 0.0
    %95 = vmatpush1.msra.mxu0 0.0
    %96 = vmatprep.subr.mxu0 0.0
    %97 = vmatpush1.msra.mxu0 0.0
    %98 = vmatprep.subr.mxu0 0.0
    %99 = vmatpush1.msra.mxu0 0.0
    %100 = vmatprep.subr.mxu0 0.0
    %101 = vmatpush1.msra.mxu0 0.0
    %102 = vmatprep.subr.mxu0 0.0
    %103 = vmatpush1.msra.mxu0 0.0
    %104 = vmatprep.subr.mxu0 0.0
    %105 = vmatpush1.msra.mxu0 0.0
    %106 = vmatprep.subr.mxu0 0.0
    %107 = vmatpush1.msra.mxu0 0.0
    %108 = vmatprep.subr.mxu0 0.0
    %109 = vmatpush1.msra.mxu0 0.0
    %110 = vmatprep.subr.mxu0 0.0
    %111 = vmatpush1.msra.mxu0 0.0
    %112 = vmatprep.subr.mxu0 0.0
    %113 = vmatpush1.msra.mxu0 0.0
    %114 = vmatprep.subr.mxu0 0.0
    %115 = vmatpush1.msra.mxu0 0.0
    %116 = vmatprep.subr.mxu0 0.0
    %117 = vmatpush1.msra.mxu0 0.0
    %118 = vmatprep.subr.mxu0 0.0
    %119 = vmatpush1.msra.mxu0 0.0
    %120 = vmatprep.subr.mxu0 0.0
    %121 = vmatpush1.msra.mxu0 0.0
    %122 = vmatprep.subr.mxu0 0.0
    %123 = vmatpush1.msra.mxu0 0.0
    %124 = vmatprep.subr.mxu0 0.0
    %125 = vmatpush1.msra.mxu0 0.0
    %126 = vmatprep.subr.mxu0 0.0
    %127 = vmatpush1.msra.mxu0 0.0
    %128 = vmatprep.subr.mxu0 0.0
    %129 = vmatpush1.msra.mxu0 0.0
    %130 = vmatprep.mubr.f32.mxu0 0.0
    %131 = vmatmul.mubr.f32.gmra.mrb[0].mxu0 %v61
    %v132 = vpop.f32.mrb[0].mxu0
    %v133 = vadd.f32 %v57, %v132
    %v134 = vpop.f32.mrb[0].mxu0
    %135 = vmatprep.mubr.f32.mxu0 0.0
    %136 = vmatmul.mubr.f32.gmra.mrb[0].mxu0 %v64
    %v137 = vpop.f32.mrb[0].mxu0
    %v138 = vadd.f32 %v57, %v137
    %v139 = vpop.f32.mrb[0].mxu0
    %140 = vdwg.mxu0
    %141 = vst [vmem:[#allocation7] sm:$0xff] %v133
    %142 = vst [vmem:[#allocation7 + $0x8] sm:$0xff] %v138
    %v143 = vmul.f32 %v133, %v133
    %v144 = vmul.f32 %v138, %v138
    %v145 = vadd.f32 %v143, %v144
    %146 = vst [vmem:[#allocation8] sm:$0xff] %v145
    // Predicated region
    $region22: #{tpu_custom_call.1} parent=1 // pred_check
      _
    $region23: #{tpu_custom_call.1} parent=1 // pred_check_branch
      %148 = sbr.rel (0) target = $region25
    $region24: #{tpu_custom_call.1} parent=1 // pred_region
      %s150 = ssub.s32 256, 256
      %151 = vsyncadd [#allocation4], %s150
      %s152 = sshll.u32 [#allocation7], 4
      %s153 = int_to_ptr.vmem [resolvable:$true] %s152
      %158 = dma.vmem_to_hbm [thread:$0]  %s153, 256, %s3, [#allocation4], 128, 128, 8
    $region25: #{tpu_custom_call.1} parent=1 // pred_fallthru
      _
    // Predicated region
    $region26: #{tpu_custom_call.1} parent=1 // pred_check
      _
    $region27: #{tpu_custom_call.1} parent=1 // pred_check_branch
      %160 = sbr.rel (0) target = $region29
    $region28: #{tpu_custom_call.1} parent=1 // pred_region
      %s162 = ssub.s32 128, 128
      %163 = vsyncadd [#allocation9], %s162
      %s165 = sshll.u32 [#allocation8], 4
      %s166 = int_to_ptr.vmem [resolvable:$true] %s165
      %168 = dma.vmem_to_hbm [thread:$0]  %s166, 128, %s4, [#allocation9]
    $region29: #{tpu_custom_call.1} parent=1 // pred_fallthru
      _
    // Predicated region
    $region30: #{tpu_custom_call.1} parent=1 // pred_check
      _
    $region31: #{tpu_custom_call.1} parent=1 // pred_check_branch
      %170 = sbr.rel (0) target = $region33
    $region32: #{tpu_custom_call.1} parent=1 // pred_region
      %171 = dma.done [#allocation4], 256
    $region33: #{tpu_custom_call.1} parent=1 // pred_fallthru
      _
    // Predicated region
    $region34: #{tpu_custom_call.1} parent=1 // pred_check
      _
    $region35: #{tpu_custom_call.1} parent=1 // pred_check_branch
      %173 = sbr.rel (0) target = $region37
    $region36: #{tpu_custom_call.1} parent=1 // pred_region
      %174 = dma.done [#allocation9], 128
    $region37: #{tpu_custom_call.1} parent=1 // pred_fallthru
      _
    %175 = vsyncpa [#allocation3], 1
    %176 = vsyncpa [#allocation6], 1
    %177 = vsyncpa [#allocation4], 1
    %178 = vsyncpa [#allocation9], 1

</llo_original>
